<compile_context>
chip_gen: v5e
topology: v5e:2x2
jax: 0.10.0
libtpu: 0.0.40
codegen_flags: <defaults>
</compile_context>

<pallas_src>
import functools

import jax
import jax.numpy as jnp
from jax import lax
from jax.experimental import pallas as pl
from jax.experimental.pallas import tpu as pltpu


def _pick_row_tile(H, W, Cin, Cout, n_batch, *, k=3,
                   vmem_budget=16 << 20, min_steps=4):
    """Largest row tile TR dividing H whose per-step VMEM footprint fits the
    budget, preferring enough grid steps (>= min_steps) so both v7x TensorCores
    get work and the double-buffered pipeline can overlap."""
    pad = (k - 1) // 2
    wp = W + 2 * pad

    def footprint(tr):
        slab = 2 * Cin * (tr + 2 * pad) * wp * 2        # bf16 slab, double-buffered
        outb = 2 * Cout * tr * W * 4                    # f32 out block, double-buffered
        res = k * k * Cout * Cin * 2 + Cout * 2 * 4     # resident weights + scale/bias
        return slab + outb + res

    divisors = [t for t in range(H, 0, -1) if H % t == 0]
    fitting = [t for t in divisors if footprint(t) <= vmem_budget] or [1]
    enough = [t for t in fitting if n_batch * (H // t) >= min_steps]
    return (enough or fitting)[0]


# ----------------------------------------------------------------------------
# Pallas kernel: 3x3 conv as 9 shifted 2-D dots over a flattened haloed slab,
# folded dequant+BatchNorm affine, ReLU, written NCHW-native.
# ----------------------------------------------------------------------------
def conv_bn_relu_kernel(slab_ref, w_ref, sb_ref, o_ref, *, KH, KW, TR, W, Wp):
    # slab_ref: (Cin, (TR + KH - 1) * Wp) bf16 integer levels (haloed rows, row-major flat)
    # w_ref:    (KH*KW, Cout, Cin)        bf16 integer levels, one (Cout, Cin) matrix per tap
    # sb_ref:   (Cout, 2) f32             [:, 0] = dequant*BN scale, [:, 1] = BN bias
    # o_ref:    (Cout, TR, W) f32         NCHW-native output rows for this (batch, slab)
    cout = o_ref.shape[0]
    L = (TR - 1) * Wp + W                 # flat span covering every valid output pixel
    acc = jnp.zeros((cout, L), jnp.float32)
    for kh in range(KH):
        for kw in range(KW):
            off = kh * Wp + kw            # static flat shift of this conv tap
            tap = slab_ref[:, off:off + L]                       # (Cin, L)
            acc = acc + lax.dot_general(
                w_ref[kh * KW + kw], tap,
                (((1,), (0,)), ((), ())),
                preferred_element_type=jnp.float32)              # (Cout, L)
    y = jnp.maximum(acc * sb_ref[:, 0:1] + sb_ref[:, 1:2], 0.0)
    for r in range(TR):                   # keep only the W valid columns per image row
        o_ref[:, r, :] = y[:, r * Wp:r * Wp + W].astype(o_ref.dtype)


# ----------------------------------------------------------------------------
# Wrapper: NCHW in / NCHW out, mirroring QuantConBnReLU.forward (eval mode).
# ----------------------------------------------------------------------------
@jax.jit
def quant_conv_bn_relu(x_nchw, w_oihw, gamma, beta, run_mean, run_var):
    eps = 1e-5
    qbound = 127.0                                       # int8 symmetric fake-quant

    N, Cin, H, W = x_nchw.shape
    Cout, _, KH, KW = w_oihw.shape
    assert KH == KW and KH % 2 == 1, "only odd square kernels (module default 3x3)"
    pad = (KH - 1) // 2                                  # module default pad=1 for k=3
    Wp = W + 2 * pad

    # --- int8 fake-quant, kept as integer levels (exact in bf16, |q| <= 127) ---
    x_amax = jnp.max(jnp.abs(x_nchw))                    # per-tensor input amax
    x_scale = jnp.where(x_amax > 0, x_amax / qbound, 1.0)
    x_int = jnp.clip(jnp.round(x_nchw / x_scale), -qbound, qbound)

    w_amax = jnp.max(jnp.abs(w_oihw), axis=(1, 2, 3))    # per-output-channel weight amax
    w_scale = jnp.where(w_amax > 0, w_amax / qbound, 1.0)
    w_int = jnp.clip(jnp.round(w_oihw / w_scale[:, None, None, None]),
                     -qbound, qbound)

    # --- haloed, row-flattened, channel-major slabs (no NCHW->NHWC transpose,
    #     no im2col materialization; only 2 halo rows duplicated per slab) ------
    x_pad = jnp.pad(x_int.astype(jnp.bfloat16),
                    ((0, 0), (0, 0), (pad, pad), (pad, pad)))   # (N, Cin, H+2p, W+2p)

    TR = _pick_row_tile(H, W, Cin, Cout, N, k=KH)
    S = H // TR
    flat = (TR + 2 * pad) * Wp
    slabs = jnp.stack(
        [x_pad[:, :, s * TR:s * TR + TR + 2 * pad, :] for s in range(S)],
        axis=1)                                          # (N, S, Cin, TR+2p, Wp)
    slabs = slabs.reshape(N, S, Cin, flat)

    # per-tap weight matrices: (KH*KW, Cout, Cin), bf16 integer levels
    w_taps = jnp.transpose(w_int, (2, 3, 0, 1)).reshape(KH * KW, Cout, Cin)
    w_taps = w_taps.astype(jnp.bfloat16)

    # --- fold dequant (x_scale * w_scale[c]) and eval-mode BatchNorm into one affine
    inv_std = 1.0 / jnp.sqrt(run_var + eps)
    bn_scale = gamma * inv_std
    scale = (bn_scale * x_scale * w_scale).astype(jnp.float32)
    bias = (beta - run_mean * bn_scale).astype(jnp.float32)
    sb = jnp.stack([scale, bias], axis=1)                # (Cout, 2) packed scale/bias

    kernel = functools.partial(conv_bn_relu_kernel,
                               KH=KH, KW=KW, TR=TR, W=W, Wp=Wp)
    out = pl.pallas_call(
        kernel,
        out_shape=jax.ShapeDtypeStruct((N, Cout, H, W), jnp.float32),
        grid=(N, S),
        in_specs=[
            pl.BlockSpec((None, None, Cin, flat), lambda n, s: (n, s, 0, 0)),
            pl.BlockSpec((KH * KW, Cout, Cin), lambda n, s: (0, 0, 0)),   # resident
            pl.BlockSpec((Cout, 2), lambda n, s: (0, 0)),                 # resident
        ],
        out_specs=pl.BlockSpec((None, Cout, TR, W), lambda n, s: (n, 0, s, 0)),
        compiler_params=pltpu.CompilerParams(
            dimension_semantics=("parallel", "parallel"),
            vmem_limit_bytes=32 * 1024 * 1024),          # v5e default scoped VMEM is 16 MiB
    )(slabs, w_taps, sb)

    return out                                           # already NCHW, no post-pass


# ----------------------------------------------------------------------------
# Pure-JAX reference (same fake-quant + conv + BN + ReLU semantics).
# ----------------------------------------------------------------------------
def fake_quant(x, amax, num_bits=8):
    bound = 2.0 ** (num_bits - 1) - 1.0
    scale = amax / bound
    scale = jnp.where(scale == 0.0, 1.0, scale)
    q = jnp.clip(jnp.round(x / scale), -bound, bound)
    return q * scale


def reference(x_nchw, w_oihw, gamma, beta, run_mean, run_var, eps=1e-5):
    x_amax = jnp.max(jnp.abs(x_nchw))
    w_amax = jnp.max(jnp.abs(w_oihw), axis=(1, 2, 3), keepdims=True)
    x_q = fake_quant(x_nchw, x_amax)
    w_q = fake_quant(w_oihw, w_amax)
    y = lax.conv_general_dilated(
        x_q, w_q, window_strides=(1, 1), padding=((1, 1), (1, 1)),
        dimension_numbers=("NCHW", "OIHW", "NCHW"),
        precision=lax.Precision.HIGHEST)
    inv_std = 1.0 / jnp.sqrt(run_var + eps)
    scale = (gamma * inv_std).reshape(1, -1, 1, 1)
    bias = (beta - run_mean * gamma * inv_std).reshape(1, -1, 1, 1)
    return jnp.maximum(y * scale + bias, 0.0)


# ----------------------------------------------------------------------------
# Deterministic parameter construction (shapes per module __init__).
# ----------------------------------------------------------------------------
def make_params(key, in_channels, out_channels, kernel_size=3):
    k_w, k_g, k_b, k_m, k_v = jax.random.split(key, 5)

    # orthogonal init of conv weight (OIHW), like torch.nn.init.orthogonal
    rows = out_channels
    cols = in_channels * kernel_size * kernel_size
    a = jax.random.normal(k_w, (max(rows, cols), min(rows, cols)), jnp.float32)
    q, r = jnp.linalg.qr(a)
    q = q * jnp.sign(jnp.diagonal(r))
    flat = q.T if rows < cols else q
    w = flat.reshape(out_channels, in_channels, kernel_size, kernel_size)

    gamma = 1.0 + 0.1 * jax.random.normal(k_g, (out_channels,), jnp.float32)
    beta = 0.1 * jax.random.normal(k_b, (out_channels,), jnp.float32)
    run_mean = 0.1 * jax.random.normal(k_m, (out_channels,), jnp.float32)
    run_var = jnp.abs(jax.random.normal(k_v, (out_channels,), jnp.float32)) + 0.5
    return w, gamma, beta, run_mean, run_var


if __name__ == "__main__":
    key = jax.random.PRNGKey(0)
    k_x, k_p = jax.random.split(key)

    N, C_in, C_out, H, W = 2, 4, 8, 16, 16
    x = jax.random.normal(k_x, (N, C_in, H, W), jnp.float32)
    w, gamma, beta, run_mean, run_var = make_params(k_p, C_in, C_out)

    out = quant_conv_bn_relu(x, w, gamma, beta, run_mean, run_var)
    out = jax.block_until_ready(out)

    ref = reference(x, w, gamma, beta, run_mean, run_var)
    assert out.shape == (N, C_out, H, W)
    # integer accumulation is exact here (K0*127^2 << 2^24); only the folded
    # scale multiplication rounds differently from the f32 reference
    assert jnp.allclose(out, ref, atol=1e-3, rtol=1e-3), "mismatch vs reference"

    print("KERNEL_OK")
</pallas_src>

<mosaic_0001>
module attributes {stable_mosaic.version = 11 : i64} {
  func.func @conv_bn_relu_kernel(%arg0: i32, %arg1: i32, %arg2: memref<1x1x4x180xbf16, #tpu.memory_space<vmem>>, %arg3: memref<9x8x4xbf16, #tpu.memory_space<vmem>>, %arg4: memref<8x2xf32, #tpu.memory_space<vmem>>, %arg5: memref<1x8x8x16xf32, #tpu.memory_space<vmem>>) attributes {dimension_semantics = [#tpu.dimension_semantics<parallel>, #tpu.dimension_semantics<parallel>], iteration_bounds = array<i64: 2, 2>, scalar_prefetch = 0 : i64, scratch_operands = 0 : i64, tpu.core_type = #tpu.core_type<tc>, window_params = [{transform_indices = @transform_0, window_bounds = array<i64: 1, 1, 4, 180>}, {pipeline_mode = #tpu.pipeline_mode<synchronous>, transform_indices = @transform_1, window_bounds = array<i64: 9, 8, 4>}, {pipeline_mode = #tpu.pipeline_mode<synchronous>, transform_indices = @transform_2, window_bounds = array<i64: 8, 2>}, {transform_indices = @transform_3, window_bounds = array<i64: 1, 8, 8, 16>}]} {
    %cst = arith.constant 0.000000e+00 : f32
    %0 = vector.broadcast %cst : f32 to vector<8x142xf32>
    %c0 = arith.constant 0 : index
    %c0_0 = arith.constant 0 : index
    %c0_1 = arith.constant 0 : index
    %c0_2 = arith.constant 0 : index
    %1 = vector.load %arg2[%c0, %c0_0, %c0_1, %c0_2] : memref<1x1x4x180xbf16, #tpu.memory_space<vmem>>, vector<1x1x4x142xbf16>
    %2 = vector.shape_cast %1 : vector<1x1x4x142xbf16> to vector<4x142xbf16>
    %c0_3 = arith.constant 0 : index
    %c0_4 = arith.constant 0 : index
    %c0_5 = arith.constant 0 : index
    %3 = vector.load %arg3[%c0_3, %c0_4, %c0_5] : memref<9x8x4xbf16, #tpu.memory_space<vmem>>, vector<1x8x4xbf16>
    %4 = vector.shape_cast %3 : vector<1x8x4xbf16> to vector<8x4xbf16>
    %cst_6 = arith.constant dense<0.000000e+00> : vector<8x142xf32>
    %5 = tpu.matmul %4, %2, %cst_6 {dimension_numbers = #tpu.dot_dimension_numbers<[1], [0], [0], [1], [0, 0, 1, 1], [], []>} : vector<8x4xbf16>, vector<4x142xbf16>, vector<8x142xf32> -> vector<8x142xf32>
    %6 = arith.addf %0, %5 : vector<8x142xf32>
    %c0_7 = arith.constant 0 : index
    %c0_8 = arith.constant 0 : index
    %c0_9 = arith.constant 0 : index
    %c1 = arith.constant 1 : index
    %7 = vector.load %arg2[%c0_7, %c0_8, %c0_9, %c1] : memref<1x1x4x180xbf16, #tpu.memory_space<vmem>>, vector<1x1x4x142xbf16>
    %8 = vector.shape_cast %7 : vector<1x1x4x142xbf16> to vector<4x142xbf16>
    %c1_10 = arith.constant 1 : index
    %c0_11 = arith.constant 0 : index
    %c0_12 = arith.constant 0 : index
    %9 = vector.load %arg3[%c1_10, %c0_11, %c0_12] : memref<9x8x4xbf16, #tpu.memory_space<vmem>>, vector<1x8x4xbf16>
    %10 = vector.shape_cast %9 : vector<1x8x4xbf16> to vector<8x4xbf16>
    %cst_13 = arith.constant dense<0.000000e+00> : vector<8x142xf32>
    %11 = tpu.matmul %10, %8, %cst_13 {dimension_numbers = #tpu.dot_dimension_numbers<[1], [0], [0], [1], [0, 0, 1, 1], [], []>} : vector<8x4xbf16>, vector<4x142xbf16>, vector<8x142xf32> -> vector<8x142xf32>
    %12 = arith.addf %6, %11 : vector<8x142xf32>
    %c0_14 = arith.constant 0 : index
    %c0_15 = arith.constant 0 : index
    %c0_16 = arith.constant 0 : index
    %c2 = arith.constant 2 : index
    %13 = vector.load %arg2[%c0_14, %c0_15, %c0_16, %c2] : memref<1x1x4x180xbf16, #tpu.memory_space<vmem>>, vector<1x1x4x142xbf16>
    %14 = vector.shape_cast %13 : vector<1x1x4x142xbf16> to vector<4x142xbf16>
    %c2_17 = arith.constant 2 : index
    %c0_18 = arith.constant 0 : index
    %c0_19 = arith.constant 0 : index
    %15 = vector.load %arg3[%c2_17, %c0_18, %c0_19] : memref<9x8x4xbf16, #tpu.memory_space<vmem>>, vector<1x8x4xbf16>
    %16 = vector.shape_cast %15 : vector<1x8x4xbf16> to vector<8x4xbf16>
    %cst_20 = arith.constant dense<0.000000e+00> : vector<8x142xf32>
    %17 = tpu.matmul %16, %14, %cst_20 {dimension_numbers = #tpu.dot_dimension_numbers<[1], [0], [0], [1], [0, 0, 1, 1], [], []>} : vector<8x4xbf16>, vector<4x142xbf16>, vector<8x142xf32> -> vector<8x142xf32>
    %18 = arith.addf %12, %17 : vector<8x142xf32>
    %c0_21 = arith.constant 0 : index
    %c0_22 = arith.constant 0 : index
    %c0_23 = arith.constant 0 : index
    %c18 = arith.constant 18 : index
    %19 = vector.load %arg2[%c0_21, %c0_22, %c0_23, %c18] : memref<1x1x4x180xbf16, #tpu.memory_space<vmem>>, vector<1x1x4x142xbf16>
    %20 = vector.shape_cast %19 : vector<1x1x4x142xbf16> to vector<4x142xbf16>
    %c3 = arith.constant 3 : index
    %c0_24 = arith.constant 0 : index
    %c0_25 = arith.constant 0 : index
    %21 = vector.load %arg3[%c3, %c0_24, %c0_25] : memref<9x8x4xbf16, #tpu.memory_space<vmem>>, vector<1x8x4xbf16>
    %22 = vector.shape_cast %21 : vector<1x8x4xbf16> to vector<8x4xbf16>
    %cst_26 = arith.constant dense<0.000000e+00> : vector<8x142xf32>
    %23 = tpu.matmul %22, %20, %cst_26 {dimension_numbers = #tpu.dot_dimension_numbers<[1], [0], [0], [1], [0, 0, 1, 1], [], []>} : vector<8x4xbf16>, vector<4x142xbf16>, vector<8x142xf32> -> vector<8x142xf32>
    %24 = arith.addf %18, %23 : vector<8x142xf32>
    %c0_27 = arith.constant 0 : index
    %c0_28 = arith.constant 0 : index
    %c0_29 = arith.constant 0 : index
    %c19 = arith.constant 19 : index
    %25 = vector.load %arg2[%c0_27, %c0_28, %c0_29, %c19] : memref<1x1x4x180xbf16, #tpu.memory_space<vmem>>, vector<1x1x4x142xbf16>
    %26 = vector.shape_cast %25 : vector<1x1x4x142xbf16> to vector<4x142xbf16>
    %c4 = arith.constant 4 : index
    %c0_30 = arith.constant 0 : index
    %c0_31 = arith.constant 0 : index
    %27 = vector.load %arg3[%c4, %c0_30, %c0_31] : memref<9x8x4xbf16, #tpu.memory_space<vmem>>, vector<1x8x4xbf16>
    %28 = vector.shape_cast %27 : vector<1x8x4xbf16> to vector<8x4xbf16>
    %cst_32 = arith.constant dense<0.000000e+00> : vector<8x142xf32>
    %29 = tpu.matmul %28, %26, %cst_32 {dimension_numbers = #tpu.dot_dimension_numbers<[1], [0], [0], [1], [0, 0, 1, 1], [], []>} : vector<8x4xbf16>, vector<4x142xbf16>, vector<8x142xf32> -> vector<8x142xf32>
    %30 = arith.addf %24, %29 : vector<8x142xf32>
    %c0_33 = arith.constant 0 : index
    %c0_34 = arith.constant 0 : index
    %c0_35 = arith.constant 0 : index
    %c20 = arith.constant 20 : index
    %31 = vector.load %arg2[%c0_33, %c0_34, %c0_35, %c20] : memref<1x1x4x180xbf16, #tpu.memory_space<vmem>>, vector<1x1x4x142xbf16>
    %32 = vector.shape_cast %31 : vector<1x1x4x142xbf16> to vector<4x142xbf16>
    %c5 = arith.constant 5 : index
    %c0_36 = arith.constant 0 : index
    %c0_37 = arith.constant 0 : index
    %33 = vector.load %arg3[%c5, %c0_36, %c0_37] : memref<9x8x4xbf16, #tpu.memory_space<vmem>>, vector<1x8x4xbf16>
    %34 = vector.shape_cast %33 : vector<1x8x4xbf16> to vector<8x4xbf16>
    %cst_38 = arith.constant dense<0.000000e+00> : vector<8x142xf32>
    %35 = tpu.matmul %34, %32, %cst_38 {dimension_numbers = #tpu.dot_dimension_numbers<[1], [0], [0], [1], [0, 0, 1, 1], [], []>} : vector<8x4xbf16>, vector<4x142xbf16>, vector<8x142xf32> -> vector<8x142xf32>
    %36 = arith.addf %30, %35 : vector<8x142xf32>
    %c0_39 = arith.constant 0 : index
    %c0_40 = arith.constant 0 : index
    %c0_41 = arith.constant 0 : index
    %c36 = arith.constant 36 : index
    %37 = vector.load %arg2[%c0_39, %c0_40, %c0_41, %c36] : memref<1x1x4x180xbf16, #tpu.memory_space<vmem>>, vector<1x1x4x142xbf16>
    %38 = vector.shape_cast %37 : vector<1x1x4x142xbf16> to vector<4x142xbf16>
    %c6 = arith.constant 6 : index
    %c0_42 = arith.constant 0 : index
    %c0_43 = arith.constant 0 : index
    %39 = vector.load %arg3[%c6, %c0_42, %c0_43] : memref<9x8x4xbf16, #tpu.memory_space<vmem>>, vector<1x8x4xbf16>
    %40 = vector.shape_cast %39 : vector<1x8x4xbf16> to vector<8x4xbf16>
    %cst_44 = arith.constant dense<0.000000e+00> : vector<8x142xf32>
    %41 = tpu.matmul %40, %38, %cst_44 {dimension_numbers = #tpu.dot_dimension_numbers<[1], [0], [0], [1], [0, 0, 1, 1], [], []>} : vector<8x4xbf16>, vector<4x142xbf16>, vector<8x142xf32> -> vector<8x142xf32>
    %42 = arith.addf %36, %41 : vector<8x142xf32>
    %c0_45 = arith.constant 0 : index
    %c0_46 = arith.constant 0 : index
    %c0_47 = arith.constant 0 : index
    %c37 = arith.constant 37 : index
    %43 = vector.load %arg2[%c0_45, %c0_46, %c0_47, %c37] : memref<1x1x4x180xbf16, #tpu.memory_space<vmem>>, vector<1x1x4x142xbf16>
    %44 = vector.shape_cast %43 : vector<1x1x4x142xbf16> to vector<4x142xbf16>
    %c7 = arith.constant 7 : index
    %c0_48 = arith.constant 0 : index
    %c0_49 = arith.constant 0 : index
    %45 = vector.load %arg3[%c7, %c0_48, %c0_49] : memref<9x8x4xbf16, #tpu.memory_space<vmem>>, vector<1x8x4xbf16>
    %46 = vector.shape_cast %45 : vector<1x8x4xbf16> to vector<8x4xbf16>
    %cst_50 = arith.constant dense<0.000000e+00> : vector<8x142xf32>
    %47 = tpu.matmul %46, %44, %cst_50 {dimension_numbers = #tpu.dot_dimension_numbers<[1], [0], [0], [1], [0, 0, 1, 1], [], []>} : vector<8x4xbf16>, vector<4x142xbf16>, vector<8x142xf32> -> vector<8x142xf32>
    %48 = arith.addf %42, %47 : vector<8x142xf32>
    %c0_51 = arith.constant 0 : index
    %c0_52 = arith.constant 0 : index
    %c0_53 = arith.constant 0 : index
    %c38 = arith.constant 38 : index
    %49 = vector.load %arg2[%c0_51, %c0_52, %c0_53, %c38] : memref<1x1x4x180xbf16, #tpu.memory_space<vmem>>, vector<1x1x4x142xbf16>
    %50 = vector.shape_cast %49 : vector<1x1x4x142xbf16> to vector<4x142xbf16>
    %c8 = arith.constant 8 : index
    %c0_54 = arith.constant 0 : index
    %c0_55 = arith.constant 0 : index
    %51 = vector.load %arg3[%c8, %c0_54, %c0_55] : memref<9x8x4xbf16, #tpu.memory_space<vmem>>, vector<1x8x4xbf16>
    %52 = vector.shape_cast %51 : vector<1x8x4xbf16> to vector<8x4xbf16>
    %cst_56 = arith.constant dense<0.000000e+00> : vector<8x142xf32>
    %53 = tpu.matmul %52, %50, %cst_56 {dimension_numbers = #tpu.dot_dimension_numbers<[1], [0], [0], [1], [0, 0, 1, 1], [], []>} : vector<8x4xbf16>, vector<4x142xbf16>, vector<8x142xf32> -> vector<8x142xf32>
    %54 = arith.addf %48, %53 : vector<8x142xf32>
    %c0_57 = arith.constant 0 : index
    %c0_58 = arith.constant 0 : index
    %55 = vector.load %arg4[%c0_57, %c0_58] : memref<8x2xf32, #tpu.memory_space<vmem>>, vector<8x1xf32>
    %56 = vector.broadcast %55 : vector<8x1xf32> to vector<8x142xf32>
    %57 = arith.mulf %54, %56 : vector<8x142xf32>
    %c0_59 = arith.constant 0 : index
    %c1_60 = arith.constant 1 : index
    %58 = vector.load %arg4[%c0_59, %c1_60] : memref<8x2xf32, #tpu.memory_space<vmem>>, vector<8x1xf32>
    %59 = vector.broadcast %58 : vector<8x1xf32> to vector<8x142xf32>
    %60 = arith.addf %57, %59 : vector<8x142xf32>
    %cst_61 = arith.constant 0.000000e+00 : f32
    %61 = vector.broadcast %cst_61 : f32 to vector<8x142xf32>
    %62 = arith.maximumf %60, %61 : vector<8x142xf32>
    %63 = vector.extract_strided_slice %62 {offsets = [0, 0], sizes = [8, 16], strides = [1, 1]} : vector<8x142xf32> to vector<8x16xf32>
    %c0_62 = arith.constant 0 : index
    %c0_63 = arith.constant 0 : index
    %c0_64 = arith.constant 0 : index
    %c0_65 = arith.constant 0 : index
    %64 = vector.load %arg5[%c0_62, %c0_63, %c0_64, %c0_65] : memref<1x8x8x16xf32, #tpu.memory_space<vmem>>, vector<1x8x1x16xf32>
    %65 = vector.shape_cast %64 : vector<1x8x1x16xf32> to vector<8x16xf32>
    %66 = vector.shape_cast %63 : vector<8x16xf32> to vector<1x8x1x16xf32>
    tpu.vector_store %arg5[%c0_62, %c0_63, %c0_64, %c0_65], %66 {strides = array<i32>} : memref<1x8x8x16xf32, #tpu.memory_space<vmem>>, vector<1x8x1x16xf32>,
    %67 = vector.extract_strided_slice %62 {offsets = [0, 18], sizes = [8, 16], strides = [1, 1]} : vector<8x142xf32> to vector<8x16xf32>
    %c0_66 = arith.constant 0 : index
    %c0_67 = arith.constant 0 : index
    %c1_68 = arith.constant 1 : index
    %c0_69 = arith.constant 0 : index
    %68 = vector.load %arg5[%c0_66, %c0_67, %c1_68, %c0_69] : memref<1x8x8x16xf32, #tpu.memory_space<vmem>>, vector<1x8x1x16xf32>
    %69 = vector.shape_cast %68 : vector<1x8x1x16xf32> to vector<8x16xf32>
    %70 = vector.shape_cast %67 : vector<8x16xf32> to vector<1x8x1x16xf32>
    tpu.vector_store %arg5[%c0_66, %c0_67, %c1_68, %c0_69], %70 {strides = array<i32>} : memref<1x8x8x16xf32, #tpu.memory_space<vmem>>, vector<1x8x1x16xf32>,
    %71 = vector.extract_strided_slice %62 {offsets = [0, 36], sizes = [8, 16], strides = [1, 1]} : vector<8x142xf32> to vector<8x16xf32>
    %c0_70 = arith.constant 0 : index
    %c0_71 = arith.constant 0 : index
    %c2_72 = arith.constant 2 : index
    %c0_73 = arith.constant 0 : index
    %72 = vector.load %arg5[%c0_70, %c0_71, %c2_72, %c0_73] : memref<1x8x8x16xf32, #tpu.memory_space<vmem>>, vector<1x8x1x16xf32>
    %73 = vector.shape_cast %72 : vector<1x8x1x16xf32> to vector<8x16xf32>
    %74 = vector.shape_cast %71 : vector<8x16xf32> to vector<1x8x1x16xf32>
    tpu.vector_store %arg5[%c0_70, %c0_71, %c2_72, %c0_73], %74 {strides = array<i32>} : memref<1x8x8x16xf32, #tpu.memory_space<vmem>>, vector<1x8x1x16xf32>,
    %75 = vector.extract_strided_slice %62 {offsets = [0, 54], sizes = [8, 16], strides = [1, 1]} : vector<8x142xf32> to vector<8x16xf32>
    %c0_74 = arith.constant 0 : index
    %c0_75 = arith.constant 0 : index
    %c3_76 = arith.constant 3 : index
    %c0_77 = arith.constant 0 : index
    %76 = vector.load %arg5[%c0_74, %c0_75, %c3_76, %c0_77] : memref<1x8x8x16xf32, #tpu.memory_space<vmem>>, vector<1x8x1x16xf32>
    %77 = vector.shape_cast %76 : vector<1x8x1x16xf32> to vector<8x16xf32>
    %78 = vector.shape_cast %75 : vector<8x16xf32> to vector<1x8x1x16xf32>
    tpu.vector_store %arg5[%c0_74, %c0_75, %c3_76, %c0_77], %78 {strides = array<i32>} : memref<1x8x8x16xf32, #tpu.memory_space<vmem>>, vector<1x8x1x16xf32>,
    %79 = vector.extract_strided_slice %62 {offsets = [0, 72], sizes = [8, 16], strides = [1, 1]} : vector<8x142xf32> to vector<8x16xf32>
    %c0_78 = arith.constant 0 : index
    %c0_79 = arith.constant 0 : index
    %c4_80 = arith.constant 4 : index
    %c0_81 = arith.constant 0 : index
    %80 = vector.load %arg5[%c0_78, %c0_79, %c4_80, %c0_81] : memref<1x8x8x16xf32, #tpu.memory_space<vmem>>, vector<1x8x1x16xf32>
    %81 = vector.shape_cast %80 : vector<1x8x1x16xf32> to vector<8x16xf32>
    %82 = vector.shape_cast %79 : vector<8x16xf32> to vector<1x8x1x16xf32>
    tpu.vector_store %arg5[%c0_78, %c0_79, %c4_80, %c0_81], %82 {strides = array<i32>} : memref<1x8x8x16xf32, #tpu.memory_space<vmem>>, vector<1x8x1x16xf32>,
    %83 = vector.extract_strided_slice %62 {offsets = [0, 90], sizes = [8, 16], strides = [1, 1]} : vector<8x142xf32> to vector<8x16xf32>
    %c0_82 = arith.constant 0 : index
    %c0_83 = arith.constant 0 : index
    %c5_84 = arith.constant 5 : index
    %c0_85 = arith.constant 0 : index
    %84 = vector.load %arg5[%c0_82, %c0_83, %c5_84, %c0_85] : memref<1x8x8x16xf32, #tpu.memory_space<vmem>>, vector<1x8x1x16xf32>
    %85 = vector.shape_cast %84 : vector<1x8x1x16xf32> to vector<8x16xf32>
    %86 = vector.shape_cast %83 : vector<8x16xf32> to vector<1x8x1x16xf32>
    tpu.vector_store %arg5[%c0_82, %c0_83, %c5_84, %c0_85], %86 {strides = array<i32>} : memref<1x8x8x16xf32, #tpu.memory_space<vmem>>, vector<1x8x1x16xf32>,
    %87 = vector.extract_strided_slice %62 {offsets = [0, 108], sizes = [8, 16], strides = [1, 1]} : vector<8x142xf32> to vector<8x16xf32>
    %c0_86 = arith.constant 0 : index
    %c0_87 = arith.constant 0 : index
    %c6_88 = arith.constant 6 : index
    %c0_89 = arith.constant 0 : index
    %88 = vector.load %arg5[%c0_86, %c0_87, %c6_88, %c0_89] : memref<1x8x8x16xf32, #tpu.memory_space<vmem>>, vector<1x8x1x16xf32>
    %89 = vector.shape_cast %88 : vector<1x8x1x16xf32> to vector<8x16xf32>
    %90 = vector.shape_cast %87 : vector<8x16xf32> to vector<1x8x1x16xf32>
    tpu.vector_store %arg5[%c0_86, %c0_87, %c6_88, %c0_89], %90 {strides = array<i32>} : memref<1x8x8x16xf32, #tpu.memory_space<vmem>>, vector<1x8x1x16xf32>,
    %91 = vector.extract_strided_slice %62 {offsets = [0, 126], sizes = [8, 16], strides = [1, 1]} : vector<8x142xf32> to vector<8x16xf32>
    %c0_90 = arith.constant 0 : index
    %c0_91 = arith.constant 0 : index
    %c7_92 = arith.constant 7 : index
    %c0_93 = arith.constant 0 : index
    %92 = vector.load %arg5[%c0_90, %c0_91, %c7_92, %c0_93] : memref<1x8x8x16xf32, #tpu.memory_space<vmem>>, vector<1x8x1x16xf32>
    %93 = vector.shape_cast %92 : vector<1x8x1x16xf32> to vector<8x16xf32>
    %94 = vector.shape_cast %91 : vector<8x16xf32> to vector<1x8x1x16xf32>
    tpu.vector_store %arg5[%c0_90, %c0_91, %c7_92, %c0_93], %94 {strides = array<i32>} : memref<1x8x8x16xf32, #tpu.memory_space<vmem>>, vector<1x8x1x16xf32>,
    return
  }
  func.func @transform_0(%arg0: i32, %arg1: i32) -> (i32, i32, i32, i32) {
    %c0_i32 = arith.constant 0 : i32
    %c0_i32_0 = arith.constant 0 : i32
    %c0_i32_1 = arith.constant 0 : i32
    return %arg0, %arg1, %c0_i32, %c0_i32_0 : i32, i32, i32, i32
  }
  func.func @transform_1(%arg0: i32, %arg1: i32) -> (i32, i32, i32) {
    %c0_i32 = arith.constant 0 : i32
    %c0_i32_0 = arith.constant 0 : i32
    %c0_i32_1 = arith.constant 0 : i32
    %c0_i32_2 = arith.constant 0 : i32
    return %c0_i32, %c0_i32_0, %c0_i32_1 : i32, i32, i32
  }
  func.func @transform_2(%arg0: i32, %arg1: i32) -> (i32, i32) {
    %c0_i32 = arith.constant 0 : i32
    %c0_i32_0 = arith.constant 0 : i32
    %c0_i32_1 = arith.constant 0 : i32
    return %c0_i32, %c0_i32_0 : i32, i32
  }
  func.func @transform_3(%arg0: i32, %arg1: i32) -> (i32, i32, i32, i32) {
    %c0_i32 = arith.constant 0 : i32
    %c0_i32_0 = arith.constant 0 : i32
    %c0_i32_1 = arith.constant 0 : i32
    return %arg0, %c0_i32, %arg1, %c0_i32_0 : i32, i32, i32, i32
  }
}

</mosaic_0001>

<llo_original>
// kernel: quant_conv_bn_relu.1
$region0: #{quant_conv_bn_relu.1}
  #allocation0 [shape = 'u32[]', space=smem, size = 0x4, offset = 0x4, fixed_abs, tag = 'smem constant byte address 0x4 - core index']
  #allocation1 [shape = 'u32[72,128]{1,0:T(1,128)}', space=vmem, size = 0x9000, scoped, tag = 'internal scratch']
  %s0 = inlined_call_operand.vmem [shape: bf16[2,2,4,180], index: 0, kind: input, shape index: {}]
  %s1 = inlined_call_operand.vmem [shape: bf16[9,8,4], index: 1, kind: input, shape index: {}]
  %s2 = inlined_call_operand.vmem [shape: f32[8,2], index: 2, kind: input, shape index: {}]
  %s3 = inlined_call_operand.hbm [shape: f32[2,8,16,16], index: 3, kind: output, shape index: {}]
  %s4 = sld [smem:[#allocation0]]
  $region45: #{quant_conv_bn_relu.1} parent=0
    _
  %s6 = ssub.s32 1, %s4
  %s7 = scalar_select 0, %s6, %s4
  $region1: #{quant_conv_bn_relu.1} parent=0
    #allocation2 [shape = 'u8[65536]{0}', space=vmem, size = 0x10000, scoped, tag = 'output window, operand 0']
    #allocation3 [shape = 's32[2]{0}', space=sflag, size = 0x8, scoped, tag = 'scoped memory for quant_conv_bn_relu.1']
    %8 = vsyncpa [#allocation3], 0
    %s9 = scalar_lea.sflag [#allocation3], 1
    %10 = vsyncpa %s9, 0
    loop: start=0, step=1, limit=6
    $region2: #{quant_conv_bn_relu.1} parent=1 // loop_pre_header
      _
    $region3: #{quant_conv_bn_relu.1} parent=1 // loop_header
      %s12 = sphi 0, %s16
      %p13 = scmp.ge.s32.totalorder %s12, 6
      %s19 = sphi 0, %s31
      %s20 = sphi 0, %s27
      %s21 = sphi 0, %s19
      %s22 = sphi 0, %s20
      %s23 = sphi 0, %s21
      %s24 = sphi 0, %s22
      %s36 = sphi 0, %s38
      %s39 = sphi 0, %s36
      %s40 = sphi 0, %s39
      %s56 = sphi 0, %s40
      %s60 = sphi 0, %s60
      %s62 = sphi 0, %s60
      %s63 = sphi 0, %s62
      %s77 = sphi 0, %s63
      %s81 = sphi 0, %s81
      %s83 = sphi 0, %s81
      %s84 = sphi 0, %s83
      %s98 = sphi 0, %s84
      %s106 = sphi 0, %s108
      %s109 = sphi 0, %s106
      %s110 = sphi 0, %s109
      %s126 = sphi 0, %s110
    $region4: #{quant_conv_bn_relu.1} parent=1 // loop_header_branch
      %15 = sbr.rel (%p13) target = $region8
    $region5: #{quant_conv_bn_relu.1} parent=1 // loop_body
      %s17 = ssub.s32 %s12, 1
      %s18 = ssub.s32 %s12, 2
      %s25 = sadd.s32 1, %s20
      %p26 = scmp.ge.s32.totalorder %s25, 2
      %s27 = scalar_select %p26, 0, %s25
      %s28 = sadd.s32 1, %s19
      %s29 = scalar_select %p26, %s28, %s19
      %p30 = scmp.ge.s32.totalorder %s29, 2
      %s31 = scalar_select %p30, 0, %s29
      %s32 = ssub.s32 %s19, %s31
      %s33 = ssub.s32 %s20, %s27
      %s34 = sor.u32 %s32, %s33
      %p35 = scmp.eq.s32.totalorder %s34, 0
      %s37 = sadd.s32 %s36, 1
      %s38 = scalar_select %p35, %s36, %s37
      %p41 = pneg %p35
      %p42 = scmp.eq.s32.totalorder %s12, 3
      %p43 = por %p41, %p42
      %p44 = scmp.ne.s32.totalorder %s36, %s39
      %p45 = scmp.eq.s32.totalorder %s12, 0
      %p46 = por %p44, %p45
      %p47 = scmp.ne.s32.totalorder %s36, %s39
      %p48 = scmp.eq.s32.totalorder %s17, 3
      %p49 = por %p47, %p48
      %p50 = scmp.ne.s32.totalorder %s39, %s40
      %p51 = scmp.eq.s32.totalorder %s17, 0
      %p52 = por %p50, %p51
      %p53 = scmp.ne.s32.totalorder %s39, %s40
      %p54 = scmp.eq.s32.totalorder %s18, 3
      %p55 = por %p53, %p54
      %p57 = scmp.ne.s32.totalorder %s40, %s56
      %p58 = scmp.eq.s32.totalorder %s18, 0
      %p59 = por %p57, %p58
      %s61 = sadd.s32 %s60, 1
      %p64 = scmp.eq.s32.totalorder %s12, 3
      %p65 = scmp.ne.s32.totalorder %s60, %s62
      %p66 = scmp.eq.s32.totalorder %s12, 0
      %p67 = por %p65, %p66
      %p68 = scmp.ne.s32.totalorder %s60, %s62
      %p69 = scmp.eq.s32.totalorder %s17, 3
      %p70 = por %p68, %p69
      %p71 = scmp.ne.s32.totalorder %s62, %s63
      %p72 = scmp.eq.s32.totalorder %s17, 0
      %p73 = por %p71, %p72
      %p74 = scmp.ne.s32.totalorder %s62, %s63
      %p75 = scmp.eq.s32.totalorder %s18, 3
      %p76 = por %p74, %p75
      %p78 = scmp.ne.s32.totalorder %s63, %s77
      %p79 = scmp.eq.s32.totalorder %s18, 0
      %p80 = por %p78, %p79
      %s82 = sadd.s32 %s81, 1
      %p85 = scmp.eq.s32.totalorder %s12, 3
      %p86 = scmp.ne.s32.totalorder %s81, %s83
      %p87 = scmp.eq.s32.totalorder %s12, 0
      %p88 = por %p86, %p87
      %p89 = scmp.ne.s32.totalorder %s81, %s83
      %p90 = scmp.eq.s32.totalorder %s17, 3
      %p91 = por %p89, %p90
      %p92 = scmp.ne.s32.totalorder %s83, %s84
      %p93 = scmp.eq.s32.totalorder %s17, 0
      %p94 = por %p92, %p93
      %p95 = scmp.ne.s32.totalorder %s83, %s84
      %p96 = scmp.eq.s32.totalorder %s18, 3
      %p97 = por %p95, %p96
      %p99 = scmp.ne.s32.totalorder %s84, %s98
      %p100 = scmp.eq.s32.totalorder %s18, 0
      %p101 = por %p99, %p100
      %s102 = ssub.s32 %s19, %s31
      %s103 = ssub.s32 %s20, %s27
      %s104 = sor.u32 %s102, %s103
      %p105 = scmp.eq.s32.totalorder %s104, 0
      %s107 = sadd.s32 %s106, 1
      %s108 = scalar_select %p105, %s106, %s107
      %p111 = pneg %p105
      %p112 = scmp.eq.s32.totalorder %s12, 3
      %p113 = por %p111, %p112
      %p114 = scmp.ne.s32.totalorder %s106, %s109
      %p115 = scmp.eq.s32.totalorder %s12, 0
      %p116 = por %p114, %p115
      %p117 = scmp.ne.s32.totalorder %s106, %s109
      %p118 = scmp.eq.s32.totalorder %s17, 3
      %p119 = por %p117, %p118
      %p120 = scmp.ne.s32.totalorder %s109, %s110
      %p121 = scmp.eq.s32.totalorder %s17, 0
      %p122 = por %p120, %p121
      %p123 = scmp.ne.s32.totalorder %s109, %s110
      %p124 = scmp.eq.s32.totalorder %s18, 3
      %p125 = por %p123, %p124
      %p127 = scmp.ne.s32.totalorder %s110, %s126
      %p128 = scmp.eq.s32.totalorder %s18, 0
      %p129 = por %p127, %p128
      %p130 = scmp.le.s32.totalorder 1, %s12
      %p131 = scmp.lt.s32.totalorder %s12, 5
      %p132 = pnand %p130, %p131
      %p133 = pneg %p132
      // Predicated region
      $region9: #{quant_conv_bn_relu.1} parent=5 // pred_check
        _
      $region10: #{quant_conv_bn_relu.1} parent=5 // pred_check_branch
        %135 = sbr.rel (%p132) target = $region12
      $region11: #{quant_conv_bn_relu.1} parent=5 // pred_region
        %s136 = ssub.s32 %s12, 1
        // Predicated region
        $region13: #{quant_conv_bn_relu.1} parent=11 // pred_check
          %p137 = pneg %p73
        $region14: #{quant_conv_bn_relu.1} parent=11 // pred_check_branch
          %139 = sbr.rel (%p137) target = $region16
        $region15: #{quant_conv_bn_relu.1} parent=11 // pred_region
          _
        $region16: #{quant_conv_bn_relu.1} parent=11 // pred_fallthru
          _
        // Predicated region
        $region17: #{quant_conv_bn_relu.1} parent=11 // pred_check
          %p140 = pneg %p94
        $region18: #{quant_conv_bn_relu.1} parent=11 // pred_check_branch
          %142 = sbr.rel (%p140) target = $region20
        $region19: #{quant_conv_bn_relu.1} parent=11 // pred_region
          _
        $region20: #{quant_conv_bn_relu.1} parent=11 // pred_fallthru
          _
      $region12: #{quant_conv_bn_relu.1} parent=5 // pred_fallthru
        _
      %p143 = scmp.lt.s32.totalorder %s12, 4
      // Predicated region
      $region21: #{quant_conv_bn_relu.1} parent=5 // pred_check
        %p144 = pneg %p143
      $region22: #{quant_conv_bn_relu.1} parent=5 // pred_check_branch
        %146 = sbr.rel (%p144) target = $region24
      $region23: #{quant_conv_bn_relu.1} parent=5 // pred_region
        // Predicated region
        $region25: #{quant_conv_bn_relu.1} parent=23 // pred_check
          %p147 = pneg %p46
        $region26: #{quant_conv_bn_relu.1} parent=23 // pred_check_branch
          %149 = sbr.rel (%p147) target = $region28
        $region27: #{quant_conv_bn_relu.1} parent=23 // pred_region
          %p150 = scmp.lt.s32.totalorder %s19, 1
          %s151 = scalar_select %p150, %s19, 1
          %p152 = scmp.lt.s32.totalorder %s20, 1
          %s153 = scalar_select %p152, %s20, 1
          %s154 = smul.addr %s153, 2
          %s155 = smul.addr %s151, 4
          %s156 = sadd.s32 %s154, %s155
          %s157 = smul.addr %s156, 2
          %s158 = scalar_lea.vmem %s0, %s157
        $region28: #{quant_conv_bn_relu.1} parent=23 // pred_fallthru
          _
      $region24: #{quant_conv_bn_relu.1} parent=5 // pred_fallthru
        _
      %p159 = scmp.le.s32.totalorder 1, %s12
      %p160 = scmp.lt.s32.totalorder %s12, 5
      %p161 = pnand %p159, %p160
      %p162 = pneg %p161
      // Predicated region
      $region29: #{quant_conv_bn_relu.1} parent=5 // pred_check
        _
      $region30: #{quant_conv_bn_relu.1} parent=5 // pred_check_branch
        %164 = sbr.rel (%p161) target = $region32
      $region31: #{quant_conv_bn_relu.1} parent=5 // pred_region
        %s165 = ssub.s32 %s12, 1
        %p166 = scmp.lt.s32.totalorder %s21, 1
        %s167 = scalar_select %p166, %s21, 1
        %p168 = scmp.lt.s32.totalorder %s22, 1
        %s169 = scalar_select %p168, %s22, 1
        %s170 = smul.addr %s169, 2
        %s171 = smul.addr %s167, 4
        %s172 = sadd.s32 %s170, %s171
        %s173 = smul.addr %s172, 2
        %s174 = scalar_lea.vmem %s0, %s173
        %p175 = pneg %p52
        %p176 = pneg %p49
        %p177 = pneg %p73
        %p178 = pneg %p70
        %p179 = pneg %p94
        %p180 = pneg %p91
        %p181 = pneg %p122
        %p182 = pneg %p119
        %s183 = sand.u32 %s109, 1
        %s184 = scalar_lea.sflag [#allocation3], %s183
        %s185 = sand.u32 %s109, 1
        %s186 = smul.addr %s185, 64
        %s187 = scalar_lea.vmem [#allocation2], %s186
        %p188 = scmp.lt.s32.totalorder %s21, 1
        %s189 = scalar_select %p188, %s21, 1
        %p190 = scmp.lt.s32.totalorder %s22, 1
        %s191 = scalar_select %p190, %s22, 1
        %s192 = smul.addr %s191, 2
        %s193 = smul.addr %s189, 4
        %s194 = sadd.s32 %s192, %s193
        %s195 = smul.addr %s194, 2
        %s196 = scalar_lea.vmem %s0, %s195
        %v198 = vld [vmem:[%s196] sm:$0xf]
        %v199 = vld [vmem:[%s1] sm:$0xf]
        %s200 = scalar_lea.vmem %s1, 4
        %v201 = vld [vmem:[%s200] sm:$0xf]
        %203 = vst [vmem:[#allocation1] ss:$4 sm:$0xff] %v198
        %v204 = vld.sshfl [vmem:[#allocation1] sm:$0xff pattern:$0x73625140]
        %v206 = vld.sshfl [vmem:[#allocation1 + $0x8] sm:$0xff pattern:$0x73625140]
        %208 = vrot.lane.b32.xlu0 %v204, 127
        %v209 = vpop.permute.xlu0 %208
        %210 = vrot.lane.b32.xlu0 %v206, 127
        %v211 = vpop.permute.xlu0 %210
        %vm212 = vcmask 1039360
        %v213 = vsel %vm212, %v209, %v211
        %vm214 = vcmask 31744
        %v216 = vsel %vm214, %v201, 0
        %vm218 = vcmask 1041408
        %v220 = vsel %vm218, %v213, 0
        %v223 = vsel %vm218, %v211, 0
        %225 = vmatpush.bf16.msra.mxu0 0
        %226 = vmatpush.bf16.msra.mxu0 0
        %227 = vmatpush.bf16.msra.mxu0 0
        %228 = vmatpush.bf16.msra.mxu0 0
        %229 = vmatpush.bf16.msra.mxu0 0
        %230 = vmatpush.bf16.msra.mxu0 0
        %231 = vmatpush.bf16.msra.mxu0 0
        %232 = vmatpush.bf16.msra.mxu0 %v220
        %233 = vmatmul.bf16.gmra.mxu0 %v216
        %v234 = vpop.f32.mrf.mxu0
        %v235 = vadd.f32 0.0, %v234
        %v236 = vpop.f32.mrf.mxu0
        %237 = vdwg.mxu0
        %238 = vmatpush.bf16.msra.mxu0 0
        %239 = vmatpush.bf16.msra.mxu0 0
        %240 = vmatpush.bf16.msra.mxu0 0
        %241 = vmatpush.bf16.msra.mxu0 0
        %242 = vmatpush.bf16.msra.mxu0 0
        %243 = vmatpush.bf16.msra.mxu0 0
        %244 = vmatpush.bf16.msra.mxu0 0
        %245 = vmatpush.bf16.msra.mxu0 %v223
        %246 = vmatmul.bf16.gmra.mxu0 %v216
        %v247 = vpop.f32.mrf.mxu0
        %v248 = vadd.f32 0.0, %v247
        %v249 = vpop.f32.mrf.mxu0
        %250 = vdwg.mxu0
        %251 = vst [vmem:[#allocation1] ss:$4 sm:$0xff] %v198
        %v252 = vld.sshfl [vmem:[#allocation1] sm:$0xff pattern:$0x73625140]
        %v253 = vld.sshfl [vmem:[#allocation1 + $0x8] sm:$0xff pattern:$0x73625140]
        %v255 = vsel %vm214, %v199, 0
        %v257 = vsel %vm218, %v252, 0
        %v259 = vsel %vm218, %v253, 0
        %261 = vmatpush.bf16.msra.mxu0 0
        %262 = vmatpush.bf16.msra.mxu0 0
        %263 = vmatpush.bf16.msra.mxu0 0
        %264 = vmatpush.bf16.msra.mxu0 0
        %265 = vmatpush.bf16.msra.mxu0 0
        %266 = vmatpush.bf16.msra.mxu0 0
        %267 = vmatpush.bf16.msra.mxu0 0
        %268 = vmatpush.bf16.msra.mxu0 %v257
        %269 = vmatmul.bf16.gmra.mxu0 %v255
        %v270 = vpop.f32.mrf.mxu0
        %v271 = vadd.f32 %v235, %v270
        %v272 = vpop.f32.mrf.mxu0
        %273 = vdwg.mxu0
        %274 = vmatpush.bf16.msra.mxu0 0
        %275 = vmatpush.bf16.msra.mxu0 0
        %276 = vmatpush.bf16.msra.mxu0 0
        %277 = vmatpush.bf16.msra.mxu0 0
        %278 = vmatpush.bf16.msra.mxu0 0
        %279 = vmatpush.bf16.msra.mxu0 0
        %280 = vmatpush.bf16.msra.mxu0 0
        %281 = vmatpush.bf16.msra.mxu0 %v259
        %282 = vmatmul.bf16.gmra.mxu0 %v255
        %v283 = vpop.f32.mrf.mxu0
        %v284 = vadd.f32 %v248, %v283
        %v285 = vpop.f32.mrf.mxu0
        %286 = vdwg.mxu0
        %v287 = vld [vmem:[%s196] sm:$0xf]
        %s288 = scalar_lea.vmem %s1, 8
        %v289 = vld [vmem:[%s288] sm:$0xf]
        %291 = vst [vmem:[#allocation1] ss:$4 sm:$0xff] %v287
        %v292 = vld.sshfl [vmem:[#allocation1] sm:$0xff pattern:$0x73625140]
        %v294 = vld.sshfl [vmem:[#allocation1 + $0x8] sm:$0xff pattern:$0x73625140]
        %296 = vrot.lane.b32.xlu0 %v292, 126
        %v297 = vpop.permute.xlu0 %296
        %298 = vrot.lane.b32.xlu0 %v294, 126
        %v299 = vpop.permute.xlu0 %298
        %vm300 = vcmask 1031168
        %v301 = vsel %vm300, %v297, %v299
        %v303 = vsel %vm214, %v289, 0
        %v306 = vsel %vm218, %v301, 0
        %v309 = vsel %vm218, %v299, 0
        %311 = vmatpush.bf16.msra.mxu0 0
        %312 = vmatpush.bf16.msra.mxu0 0
        %313 = vmatpush.bf16.msra.mxu0 0
        %314 = vmatpush.bf16.msra.mxu0 0
        %315 = vmatpush.bf16.msra.mxu0 0
        %316 = vmatpush.bf16.msra.mxu0 0
        %317 = vmatpush.bf16.msra.mxu0 0
        %318 = vmatpush.bf16.msra.mxu0 %v306
        %319 = vmatmul.bf16.gmra.mxu0 %v303
        %v320 = vpop.f32.mrf.mxu0
        %v321 = vadd.f32 0.0, %v320
        %v322 = vpop.f32.mrf.mxu0
        %323 = vdwg.mxu0
        %324 = vmatpush.bf16.msra.mxu0 0
        %325 = vmatpush.bf16.msra.mxu0 0
        %326 = vmatpush.bf16.msra.mxu0 0
        %327 = vmatpush.bf16.msra.mxu0 0
        %328 = vmatpush.bf16.msra.mxu0 0
        %329 = vmatpush.bf16.msra.mxu0 0
        %330 = vmatpush.bf16.msra.mxu0 0
        %331 = vmatpush.bf16.msra.mxu0 %v309
        %332 = vmatmul.bf16.gmra.mxu0 %v303
        %v333 = vpop.f32.mrf.mxu0
        %v334 = vadd.f32 0.0, %v333
        %v335 = vpop.f32.mrf.mxu0
        %336 = vdwg.mxu0
        %v337 = vadd.f32 %v271, %v321
        %v338 = vadd.f32 %v284, %v334
        %v339 = vld [vmem:[%s196] sm:$0xf]
        %s340 = scalar_lea.vmem %s1, 12
        %v341 = vld [vmem:[%s340] sm:$0xf]
        %343 = vst [vmem:[#allocation1] ss:$4 sm:$0xff] %v339
        %v344 = vld.sshfl [vmem:[#allocation1] sm:$0xff pattern:$0x73625140]
        %v346 = vld.sshfl [vmem:[#allocation1 + $0x8] sm:$0xff pattern:$0x73625140]
        %348 = vrot.lane.b32.xlu0 %v344, 110
        %v349 = vpop.permute.xlu0 %348
        %350 = vrot.lane.b32.xlu0 %v346, 110
        %v351 = vpop.permute.xlu0 %350
        %vm352 = vcmask 900096
        %v353 = vsel %vm352, %v349, %v351
        %v355 = vsel %vm214, %v341, 0
        %v358 = vsel %vm218, %v353, 0
        %v361 = vsel %vm218, %v351, 0
        %363 = vmatpush.bf16.msra.mxu0 0
        %364 = vmatpush.bf16.msra.mxu0 0
        %365 = vmatpush.bf16.msra.mxu0 0
        %366 = vmatpush.bf16.msra.mxu0 0
        %367 = vmatpush.bf16.msra.mxu0 0
        %368 = vmatpush.bf16.msra.mxu0 0
        %369 = vmatpush.bf16.msra.mxu0 0
        %370 = vmatpush.bf16.msra.mxu0 %v358
        %371 = vmatmul.bf16.gmra.mxu0 %v355
        %v372 = vpop.f32.mrf.mxu0
        %v373 = vadd.f32 0.0, %v372
        %v374 = vpop.f32.mrf.mxu0
        %375 = vdwg.mxu0
        %376 = vmatpush.bf16.msra.mxu0 0
        %377 = vmatpush.bf16.msra.mxu0 0
        %378 = vmatpush.bf16.msra.mxu0 0
        %379 = vmatpush.bf16.msra.mxu0 0
        %380 = vmatpush.bf16.msra.mxu0 0
        %381 = vmatpush.bf16.msra.mxu0 0
        %382 = vmatpush.bf16.msra.mxu0 0
        %383 = vmatpush.bf16.msra.mxu0 %v361
        %384 = vmatmul.bf16.gmra.mxu0 %v355
        %v385 = vpop.f32.mrf.mxu0
        %v386 = vadd.f32 0.0, %v385
        %v387 = vpop.f32.mrf.mxu0
        %388 = vdwg.mxu0
        %v389 = vadd.f32 %v337, %v373
        %v390 = vadd.f32 %v338, %v386
        %v391 = vld [vmem:[%s196] sm:$0xf]
        %s392 = scalar_lea.vmem %s1, 16
        %v393 = vld [vmem:[%s392] sm:$0xf]
        %395 = vst [vmem:[#allocation1] ss:$4 sm:$0xff] %v391
        %v396 = vld.sshfl [vmem:[#allocation1] sm:$0xff pattern:$0x73625140]
        %v398 = vld.sshfl [vmem:[#allocation1 + $0x8] sm:$0xff pattern:$0x73625140]
        %400 = vrot.lane.b32.xlu0 %v396, 109
        %v401 = vpop.permute.xlu0 %400
        %402 = vrot.lane.b32.xlu0 %v398, 109
        %v403 = vpop.permute.xlu0 %402
        %vm404 = vcmask 891904
        %v405 = vsel %vm404, %v401, %v403
        %v407 = vsel %vm214, %v393, 0
        %v410 = vsel %vm218, %v405, 0
        %v413 = vsel %vm218, %v403, 0
        %415 = vmatpush.bf16.msra.mxu0 0
        %416 = vmatpush.bf16.msra.mxu0 0
        %417 = vmatpush.bf16.msra.mxu0 0
        %418 = vmatpush.bf16.msra.mxu0 0
        %419 = vmatpush.bf16.msra.mxu0 0
        %420 = vmatpush.bf16.msra.mxu0 0
        %421 = vmatpush.bf16.msra.mxu0 0
        %422 = vmatpush.bf16.msra.mxu0 %v410
        %423 = vmatmul.bf16.gmra.mxu0 %v407
        %v424 = vpop.f32.mrf.mxu0
        %v425 = vadd.f32 0.0, %v424
        %v426 = vpop.f32.mrf.mxu0
        %427 = vdwg.mxu0
        %428 = vmatpush.bf16.msra.mxu0 0
        %429 = vmatpush.bf16.msra.mxu0 0
        %430 = vmatpush.bf16.msra.mxu0 0
        %431 = vmatpush.bf16.msra.mxu0 0
        %432 = vmatpush.bf16.msra.mxu0 0
        %433 = vmatpush.bf16.msra.mxu0 0
        %434 = vmatpush.bf16.msra.mxu0 0
        %435 = vmatpush.bf16.msra.mxu0 %v413
        %436 = vmatmul.bf16.gmra.mxu0 %v407
        %v437 = vpop.f32.mrf.mxu0
        %v438 = vadd.f32 0.0, %v437
        %v439 = vpop.f32.mrf.mxu0
        %440 = vdwg.mxu0
        %v441 = vadd.f32 %v389, %v425
        %v442 = vadd.f32 %v390, %v438
        %v443 = vld [vmem:[%s196] sm:$0xf]
        %s444 = scalar_lea.vmem %s1, 20
        %v445 = vld [vmem:[%s444] sm:$0xf]
        %447 = vst [vmem:[#allocation1] ss:$4 sm:$0xff] %v443
        %v448 = vld.sshfl [vmem:[#allocation1] sm:$0xff pattern:$0x73625140]
        %v450 = vld.sshfl [vmem:[#allocation1 + $0x8] sm:$0xff pattern:$0x73625140]
        %452 = vrot.lane.b32.xlu0 %v448, 108
        %v453 = vpop.permute.xlu0 %452
        %454 = vrot.lane.b32.xlu0 %v450, 108
        %v455 = vpop.permute.xlu0 %454
        %vm456 = vcmask 883712
        %v457 = vsel %vm456, %v453, %v455
        %v459 = vsel %vm214, %v445, 0
        %v462 = vsel %vm218, %v457, 0
        %v465 = vsel %vm218, %v455, 0
        %467 = vmatpush.bf16.msra.mxu0 0
        %468 = vmatpush.bf16.msra.mxu0 0
        %469 = vmatpush.bf16.msra.mxu0 0
        %470 = vmatpush.bf16.msra.mxu0 0
        %471 = vmatpush.bf16.msra.mxu0 0
        %472 = vmatpush.bf16.msra.mxu0 0
        %473 = vmatpush.bf16.msra.mxu0 0
        %474 = vmatpush.bf16.msra.mxu0 %v462
        %475 = vmatmul.bf16.gmra.mxu0 %v459
        %v476 = vpop.f32.mrf.mxu0
        %v477 = vadd.f32 0.0, %v476
        %v478 = vpop.f32.mrf.mxu0
        %479 = vdwg.mxu0
        %480 = vmatpush.bf16.msra.mxu0 0
        %481 = vmatpush.bf16.msra.mxu0 0
        %482 = vmatpush.bf16.msra.mxu0 0
        %483 = vmatpush.bf16.msra.mxu0 0
        %484 = vmatpush.bf16.msra.mxu0 0
        %485 = vmatpush.bf16.msra.mxu0 0
        %486 = vmatpush.bf16.msra.mxu0 0
        %487 = vmatpush.bf16.msra.mxu0 %v465
        %488 = vmatmul.bf16.gmra.mxu0 %v459
        %v489 = vpop.f32.mrf.mxu0
        %v490 = vadd.f32 0.0, %v489
        %v491 = vpop.f32.mrf.mxu0
        %492 = vdwg.mxu0
        %v493 = vadd.f32 %v441, %v477
        %v494 = vadd.f32 %v442, %v490
        %v495 = vld [vmem:[%s196] sm:$0xf]
        %s496 = scalar_lea.vmem %s1, 24
        %v497 = vld [vmem:[%s496] sm:$0xf]
        %499 = vst [vmem:[#allocation1] ss:$4 sm:$0xff] %v495
        %v500 = vld.sshfl [vmem:[#allocation1] sm:$0xff pattern:$0x73625140]
        %v502 = vld.sshfl [vmem:[#allocation1 + $0x8] sm:$0xff pattern:$0x73625140]
        %504 = vrot.lane.b32.xlu0 %v500, 92
        %v505 = vpop.permute.xlu0 %504
        %506 = vrot.lane.b32.xlu0 %v502, 92
        %v507 = vpop.permute.xlu0 %506
        %vm508 = vcmask 752640
        %v509 = vsel %vm508, %v505, %v507
        %v511 = vsel %vm214, %v497, 0
        %v514 = vsel %vm218, %v509, 0
        %v517 = vsel %vm218, %v507, 0
        %519 = vmatpush.bf16.msra.mxu0 0
        %520 = vmatpush.bf16.msra.mxu0 0
        %521 = vmatpush.bf16.msra.mxu0 0
        %522 = vmatpush.bf16.msra.mxu0 0
        %523 = vmatpush.bf16.msra.mxu0 0
        %524 = vmatpush.bf16.msra.mxu0 0
        %525 = vmatpush.bf16.msra.mxu0 0
        %526 = vmatpush.bf16.msra.mxu0 %v514
        %527 = vmatmul.bf16.gmra.mxu0 %v511
        %v528 = vpop.f32.mrf.mxu0
        %v529 = vadd.f32 0.0, %v528
        %v530 = vpop.f32.mrf.mxu0
        %531 = vdwg.mxu0
        %532 = vmatpush.bf16.msra.mxu0 0
        %533 = vmatpush.bf16.msra.mxu0 0
        %534 = vmatpush.bf16.msra.mxu0 0
        %535 = vmatpush.bf16.msra.mxu0 0
        %536 = vmatpush.bf16.msra.mxu0 0
        %537 = vmatpush.bf16.msra.mxu0 0
        %538 = vmatpush.bf16.msra.mxu0 0
        %539 = vmatpush.bf16.msra.mxu0 %v517
        %540 = vmatmul.bf16.gmra.mxu0 %v511
        %v541 = vpop.f32.mrf.mxu0
        %v542 = vadd.f32 0.0, %v541
        %v543 = vpop.f32.mrf.mxu0
        %544 = vdwg.mxu0
        %v545 = vadd.f32 %v493, %v529
        %v546 = vadd.f32 %v494, %v542
        %v547 = vld [vmem:[%s196] sm:$0xf]
        %s548 = scalar_lea.vmem %s1, 28
        %v549 = vld [vmem:[%s548] sm:$0xf]
        %551 = vst [vmem:[#allocation1] ss:$4 sm:$0xff] %v547
        %v552 = vld.sshfl [vmem:[#allocation1] sm:$0xff pattern:$0x73625140]
        %v554 = vld.sshfl [vmem:[#allocation1 + $0x8] sm:$0xff pattern:$0x73625140]
        %556 = vrot.lane.b32.xlu0 %v552, 91
        %v557 = vpop.permute.xlu0 %556
        %558 = vrot.lane.b32.xlu0 %v554, 91
        %v559 = vpop.permute.xlu0 %558
        %vm560 = vcmask 744448
        %v561 = vsel %vm560, %v557, %v559
        %v563 = vsel %vm214, %v549, 0
        %v566 = vsel %vm218, %v561, 0
        %v569 = vsel %vm218, %v559, 0
        %571 = vmatpush.bf16.msra.mxu0 0
        %572 = vmatpush.bf16.msra.mxu0 0
        %573 = vmatpush.bf16.msra.mxu0 0
        %574 = vmatpush.bf16.msra.mxu0 0
        %575 = vmatpush.bf16.msra.mxu0 0
        %576 = vmatpush.bf16.msra.mxu0 0
        %577 = vmatpush.bf16.msra.mxu0 0
        %578 = vmatpush.bf16.msra.mxu0 %v566
        %579 = vmatmul.bf16.gmra.mxu0 %v563
        %v580 = vpop.f32.mrf.mxu0
        %v581 = vadd.f32 0.0, %v580
        %v582 = vpop.f32.mrf.mxu0
        %583 = vdwg.mxu0
        %584 = vmatpush.bf16.msra.mxu0 0
        %585 = vmatpush.bf16.msra.mxu0 0
        %586 = vmatpush.bf16.msra.mxu0 0
        %587 = vmatpush.bf16.msra.mxu0 0
        %588 = vmatpush.bf16.msra.mxu0 0
        %589 = vmatpush.bf16.msra.mxu0 0
        %590 = vmatpush.bf16.msra.mxu0 0
        %591 = vmatpush.bf16.msra.mxu0 %v569
        %592 = vmatmul.bf16.gmra.mxu0 %v563
        %v593 = vpop.f32.mrf.mxu0
        %v594 = vadd.f32 0.0, %v593
        %v595 = vpop.f32.mrf.mxu0
        %596 = vdwg.mxu0
        %v597 = vadd.f32 %v545, %v581
        %v598 = vadd.f32 %v546, %v594
        %v599 = vld [vmem:[%s196] sm:$0xf]
        %s600 = scalar_lea.vmem %s1, 32
        %v601 = vld [vmem:[%s600] sm:$0xf]
        %603 = vst [vmem:[#allocation1] ss:$4 sm:$0xff] %v599
        %v604 = vld.sshfl [vmem:[#allocation1] sm:$0xff pattern:$0x73625140]
        %v606 = vld.sshfl [vmem:[#allocation1 + $0x8] sm:$0xff pattern:$0x73625140]
        %608 = vrot.lane.b32.xlu0 %v604, 90
        %v609 = vpop.permute.xlu0 %608
        %610 = vrot.lane.b32.xlu0 %v606, 90
        %v611 = vpop.permute.xlu0 %610
        %vm612 = vcmask 736256
        %v613 = vsel %vm612, %v609, %v611
        %v615 = vsel %vm214, %v601, 0
        %v618 = vsel %vm218, %v613, 0
        %v621 = vsel %vm218, %v611, 0
        %623 = vmatpush.bf16.msra.mxu0 0
        %624 = vmatpush.bf16.msra.mxu0 0
        %625 = vmatpush.bf16.msra.mxu0 0
        %626 = vmatpush.bf16.msra.mxu0 0
        %627 = vmatpush.bf16.msra.mxu0 0
        %628 = vmatpush.bf16.msra.mxu0 0
        %629 = vmatpush.bf16.msra.mxu0 0
        %630 = vmatpush.bf16.msra.mxu0 %v618
        %631 = vmatmul.bf16.gmra.mxu0 %v615
        %v632 = vpop.f32.mrf.mxu0
        %v633 = vadd.f32 0.0, %v632
        %v634 = vpop.f32.mrf.mxu0
        %635 = vdwg.mxu0
        %636 = vmatpush.bf16.msra.mxu0 0
        %637 = vmatpush.bf16.msra.mxu0 0
        %638 = vmatpush.bf16.msra.mxu0 0
        %639 = vmatpush.bf16.msra.mxu0 0
        %640 = vmatpush.bf16.msra.mxu0 0
        %641 = vmatpush.bf16.msra.mxu0 0
        %642 = vmatpush.bf16.msra.mxu0 0
        %643 = vmatpush.bf16.msra.mxu0 %v621
        %644 = vmatmul.bf16.gmra.mxu0 %v615
        %v645 = vpop.f32.mrf.mxu0
        %v646 = vadd.f32 0.0, %v645
        %v647 = vpop.f32.mrf.mxu0
        %648 = vdwg.mxu0
        %v649 = vadd.f32 %v597, %v633
        %v650 = vadd.f32 %v598, %v646
        %v651 = vld [vmem:[%s2] sm:$0xff]
        %653 = vset.pattern.permute.xlu0 0
        %654 = vperm.xlu0 %653, %v651
        %v655 = vpop.permute.xlu0 %654
        %v657 = vmul.f32 %v649, %v655
        %v658 = vmul.f32 %v650, %v655
        %659 = vset.pattern.permute.xlu0 1
        %660 = vperm.xlu0 %659, %v651
        %v661 = vpop.permute.xlu0 %660
        %v663 = vadd.f32 %v657, %v661
        %v664 = vadd.f32 %v658, %v661
        %v665 = vmax.f32 %v663, 0.0
        %v666 = vmax.f32 %v664, 0.0
        %v668 = vrot.slane %v665, 1
        %v669 = vrot.slane %v665, 2
        %v670 = vrot.slane %v665, 3
        %v671 = vrot.slane %v665, 4
        %v672 = vrot.slane %v665, 5
        %v673 = vrot.slane %v665, 6
        %v674 = vrot.slane %v665, 7
        %vm682 = vcmask 122880
        %683 = vst.msk [vmem:[%s187] sm:$0x1] %vm682, %v665
        %684 = vst.msk [vmem:[%s187 + $0x8] sm:$0x1] %vm682, %v668
        %685 = vst.msk [vmem:[%s187 + $0x10] sm:$0x1] %vm682, %v669
        %686 = vst.msk [vmem:[%s187 + $0x18] sm:$0x1] %vm682, %v670
        %687 = vst.msk [vmem:[%s187 + $0x20] sm:$0x1] %vm682, %v671
        %688 = vst.msk [vmem:[%s187 + $0x28] sm:$0x1] %vm682, %v672
        %689 = vst.msk [vmem:[%s187 + $0x30] sm:$0x1] %vm682, %v673
        %690 = vst.msk [vmem:[%s187 + $0x38] sm:$0x1] %vm682, %v674
        %v691 = vperm.slane %v665, 0
        %v692 = vperm.slane %v668, 0
        %v693 = vperm.slane %v669, 0
        %v694 = vperm.slane %v670, 0
        %v695 = vperm.slane %v671, 0
        %v696 = vperm.slane %v672, 0
        %v697 = vperm.slane %v673, 0
        %v698 = vperm.slane %v674, 0
        %699 = vrot.lane.b32.xlu0 %v691, 110
        %v700 = vpop.permute.xlu0 %699
        %701 = vrot.lane.b32.xlu0 %v692, 110
        %v702 = vpop.permute.xlu0 %701
        %703 = vrot.lane.b32.xlu0 %v693, 110
        %v704 = vpop.permute.xlu0 %703
        %705 = vrot.lane.b32.xlu0 %v694, 110
        %v706 = vpop.permute.xlu0 %705
        %707 = vrot.lane.b32.xlu0 %v695, 110
        %v708 = vpop.permute.xlu0 %707
        %709 = vrot.lane.b32.xlu0 %v696, 110
        %v710 = vpop.permute.xlu0 %709
        %711 = vrot.lane.b32.xlu0 %v697, 110
        %v712 = vpop.permute.xlu0 %711
        %713 = vrot.lane.b32.xlu0 %v698, 110
        %v714 = vpop.permute.xlu0 %713
        %723 = vst.msk [vmem:[%s187 + $0x1] sm:$0x1] %vm682, %v700
        %724 = vst.msk [vmem:[%s187 + $0x9] sm:$0x1] %vm682, %v702
        %725 = vst.msk [vmem:[%s187 + $0x11] sm:$0x1] %vm682, %v704
        %726 = vst.msk [vmem:[%s187 + $0x19] sm:$0x1] %vm682, %v706
        %727 = vst.msk [vmem:[%s187 + $0x21] sm:$0x1] %vm682, %v708
        %728 = vst.msk [vmem:[%s187 + $0x29] sm:$0x1] %vm682, %v710
        %729 = vst.msk [vmem:[%s187 + $0x31] sm:$0x1] %vm682, %v712
        %730 = vst.msk [vmem:[%s187 + $0x39] sm:$0x1] %vm682, %v714
        %731 = vrot.lane.b32.xlu0 %v691, 92
        %v732 = vpop.permute.xlu0 %731
        %733 = vrot.lane.b32.xlu0 %v692, 92
        %v734 = vpop.permute.xlu0 %733
        %735 = vrot.lane.b32.xlu0 %v693, 92
        %v736 = vpop.permute.xlu0 %735
        %737 = vrot.lane.b32.xlu0 %v694, 92
        %v738 = vpop.permute.xlu0 %737
        %739 = vrot.lane.b32.xlu0 %v695, 92
        %v740 = vpop.permute.xlu0 %739
        %741 = vrot.lane.b32.xlu0 %v696, 92
        %v742 = vpop.permute.xlu0 %741
        %743 = vrot.lane.b32.xlu0 %v697, 92
        %v744 = vpop.permute.xlu0 %743
        %745 = vrot.lane.b32.xlu0 %v698, 92
        %v746 = vpop.permute.xlu0 %745
        %755 = vst.msk [vmem:[%s187 + $0x2] sm:$0x1] %vm682, %v732
        %756 = vst.msk [vmem:[%s187 + $0xa] sm:$0x1] %vm682, %v734
        %757 = vst.msk [vmem:[%s187 + $0x12] sm:$0x1] %vm682, %v736
        %758 = vst.msk [vmem:[%s187 + $0x1a] sm:$0x1] %vm682, %v738
        %759 = vst.msk [vmem:[%s187 + $0x22] sm:$0x1] %vm682, %v740
        %760 = vst.msk [vmem:[%s187 + $0x2a] sm:$0x1] %vm682, %v742
        %761 = vst.msk [vmem:[%s187 + $0x32] sm:$0x1] %vm682, %v744
        %762 = vst.msk [vmem:[%s187 + $0x3a] sm:$0x1] %vm682, %v746
        %763 = vrot.lane.b32.xlu0 %v691, 74
        %v764 = vpop.permute.xlu0 %763
        %765 = vrot.lane.b32.xlu0 %v692, 74
        %v766 = vpop.permute.xlu0 %765
        %767 = vrot.lane.b32.xlu0 %v693, 74
        %v768 = vpop.permute.xlu0 %767
        %769 = vrot.lane.b32.xlu0 %v694, 74
        %v770 = vpop.permute.xlu0 %769
        %771 = vrot.lane.b32.xlu0 %v695, 74
        %v772 = vpop.permute.xlu0 %771
        %773 = vrot.lane.b32.xlu0 %v696, 74
        %v774 = vpop.permute.xlu0 %773
        %775 = vrot.lane.b32.xlu0 %v697, 74
        %v776 = vpop.permute.xlu0 %775
        %777 = vrot.lane.b32.xlu0 %v698, 74
        %v778 = vpop.permute.xlu0 %777
        %787 = vst.msk [vmem:[%s187 + $0x3] sm:$0x1] %vm682, %v764
        %788 = vst.msk [vmem:[%s187 + $0xb] sm:$0x1] %vm682, %v766
        %789 = vst.msk [vmem:[%s187 + $0x13] sm:$0x1] %vm682, %v768
        %790 = vst.msk [vmem:[%s187 + $0x1b] sm:$0x1] %vm682, %v770
        %791 = vst.msk [vmem:[%s187 + $0x23] sm:$0x1] %vm682, %v772
        %792 = vst.msk [vmem:[%s187 + $0x2b] sm:$0x1] %vm682, %v774
        %793 = vst.msk [vmem:[%s187 + $0x33] sm:$0x1] %vm682, %v776
        %794 = vst.msk [vmem:[%s187 + $0x3b] sm:$0x1] %vm682, %v778
        %795 = vrot.lane.b32.xlu0 %v691, 56
        %v796 = vpop.permute.xlu0 %795
        %797 = vrot.lane.b32.xlu0 %v692, 56
        %v798 = vpop.permute.xlu0 %797
        %799 = vrot.lane.b32.xlu0 %v693, 56
        %v800 = vpop.permute.xlu0 %799
        %801 = vrot.lane.b32.xlu0 %v694, 56
        %v802 = vpop.permute.xlu0 %801
        %803 = vrot.lane.b32.xlu0 %v695, 56
        %v804 = vpop.permute.xlu0 %803
        %805 = vrot.lane.b32.xlu0 %v696, 56
        %v806 = vpop.permute.xlu0 %805
        %807 = vrot.lane.b32.xlu0 %v697, 56
        %v808 = vpop.permute.xlu0 %807
        %809 = vrot.lane.b32.xlu0 %v698, 56
        %v810 = vpop.permute.xlu0 %809
        %819 = vst.msk [vmem:[%s187 + $0x4] sm:$0x1] %vm682, %v796
        %820 = vst.msk [vmem:[%s187 + $0xc] sm:$0x1] %vm682, %v798
        %821 = vst.msk [vmem:[%s187 + $0x14] sm:$0x1] %vm682, %v800
        %822 = vst.msk [vmem:[%s187 + $0x1c] sm:$0x1] %vm682, %v802
        %823 = vst.msk [vmem:[%s187 + $0x24] sm:$0x1] %vm682, %v804
        %824 = vst.msk [vmem:[%s187 + $0x2c] sm:$0x1] %vm682, %v806
        %825 = vst.msk [vmem:[%s187 + $0x34] sm:$0x1] %vm682, %v808
        %826 = vst.msk [vmem:[%s187 + $0x3c] sm:$0x1] %vm682, %v810
        %827 = vrot.lane.b32.xlu0 %v691, 38
        %v828 = vpop.permute.xlu0 %827
        %829 = vrot.lane.b32.xlu0 %v692, 38
        %v830 = vpop.permute.xlu0 %829
        %831 = vrot.lane.b32.xlu0 %v693, 38
        %v832 = vpop.permute.xlu0 %831
        %833 = vrot.lane.b32.xlu0 %v694, 38
        %v834 = vpop.permute.xlu0 %833
        %835 = vrot.lane.b32.xlu0 %v695, 38
        %v836 = vpop.permute.xlu0 %835
        %837 = vrot.lane.b32.xlu0 %v696, 38
        %v838 = vpop.permute.xlu0 %837
        %839 = vrot.lane.b32.xlu0 %v697, 38
        %v840 = vpop.permute.xlu0 %839
        %841 = vrot.lane.b32.xlu0 %v698, 38
        %v842 = vpop.permute.xlu0 %841
        %851 = vst.msk [vmem:[%s187 + $0x5] sm:$0x1] %vm682, %v828
        %852 = vst.msk [vmem:[%s187 + $0xd] sm:$0x1] %vm682, %v830
        %853 = vst.msk [vmem:[%s187 + $0x15] sm:$0x1] %vm682, %v832
        %854 = vst.msk [vmem:[%s187 + $0x1d] sm:$0x1] %vm682, %v834
        %855 = vst.msk [vmem:[%s187 + $0x25] sm:$0x1] %vm682, %v836
        %856 = vst.msk [vmem:[%s187 + $0x2d] sm:$0x1] %vm682, %v838
        %857 = vst.msk [vmem:[%s187 + $0x35] sm:$0x1] %vm682, %v840
        %858 = vst.msk [vmem:[%s187 + $0x3d] sm:$0x1] %vm682, %v842
        %859 = vrot.lane.b32.xlu0 %v691, 20
        %v860 = vpop.permute.xlu0 %859
        %861 = vrot.lane.b32.xlu0 %v692, 20
        %v862 = vpop.permute.xlu0 %861
        %863 = vrot.lane.b32.xlu0 %v693, 20
        %v864 = vpop.permute.xlu0 %863
        %865 = vrot.lane.b32.xlu0 %v694, 20
        %v866 = vpop.permute.xlu0 %865
        %867 = vrot.lane.b32.xlu0 %v695, 20
        %v868 = vpop.permute.xlu0 %867
        %869 = vrot.lane.b32.xlu0 %v696, 20
        %v870 = vpop.permute.xlu0 %869
        %871 = vrot.lane.b32.xlu0 %v697, 20
        %v872 = vpop.permute.xlu0 %871
        %873 = vrot.lane.b32.xlu0 %v698, 20
        %v874 = vpop.permute.xlu0 %873
        %883 = vst.msk [vmem:[%s187 + $0x6] sm:$0x1] %vm682, %v860
        %884 = vst.msk [vmem:[%s187 + $0xe] sm:$0x1] %vm682, %v862
        %885 = vst.msk [vmem:[%s187 + $0x16] sm:$0x1] %vm682, %v864
        %886 = vst.msk [vmem:[%s187 + $0x1e] sm:$0x1] %vm682, %v866
        %887 = vst.msk [vmem:[%s187 + $0x26] sm:$0x1] %vm682, %v868
        %888 = vst.msk [vmem:[%s187 + $0x2e] sm:$0x1] %vm682, %v870
        %889 = vst.msk [vmem:[%s187 + $0x36] sm:$0x1] %vm682, %v872
        %890 = vst.msk [vmem:[%s187 + $0x3e] sm:$0x1] %vm682, %v874
        %v892 = vrot.slane %v666, 7
        %vm893 = vcmask 1040384
        %v894 = vsel %vm893, %v665, %v892
        %vm895 = vcmask 1041409
        %v896 = vsel %vm895, %v665, %v892
        %v897 = vrot.slane %v896, 1
        %vm898 = vcmask 1042434
        %v899 = vsel %vm898, %v665, %v892
        %v900 = vrot.slane %v899, 2
        %vm901 = vcmask 1043459
        %v902 = vsel %vm901, %v665, %v892
        %v903 = vrot.slane %v902, 3
        %vm904 = vcmask 1044484
        %v905 = vsel %vm904, %v665, %v892
        %v906 = vrot.slane %v905, 4
        %vm907 = vcmask 1045509
        %v908 = vsel %vm907, %v665, %v892
        %v909 = vrot.slane %v908, 5
        %vm910 = vcmask 1046534
        %v911 = vsel %vm910, %v665, %v892
        %v912 = vrot.slane %v911, 6
        %vm913 = vcmask 1046528
        %v914 = vsel %vm913, %v892, %v665
        %v915 = vrot.slane %v914, 7
        %v916 = vperm.slane %v894, 0
        %v917 = vperm.slane %v894, 1
        %v918 = vperm.slane %v897, 0
        %v919 = vperm.slane %v897, 1
        %v920 = vperm.slane %v900, 0
        %v921 = vperm.slane %v900, 1
        %v922 = vperm.slane %v903, 0
        %v923 = vperm.slane %v903, 1
        %v924 = vperm.slane %v906, 0
        %v925 = vperm.slane %v906, 1
        %v926 = vperm.slane %v909, 0
        %v927 = vperm.slane %v909, 1
        %v928 = vperm.slane %v912, 0
        %v929 = vperm.slane %v912, 1
        %v930 = vperm.slane %v915, 0
        %v931 = vperm.slane %v915, 1
        %932 = vrot.lane.b32.xlu0 %v916, 2
        %v933 = vpop.permute.xlu0 %932
        %934 = vrot.lane.b32.xlu0 %v917, 2
        %v935 = vpop.permute.xlu0 %934
        %936 = vrot.lane.b32.xlu0 %v918, 2
        %v937 = vpop.permute.xlu0 %936
        %938 = vrot.lane.b32.xlu0 %v919, 2
        %v939 = vpop.permute.xlu0 %938
        %940 = vrot.lane.b32.xlu0 %v920, 2
        %v941 = vpop.permute.xlu0 %940
        %942 = vrot.lane.b32.xlu0 %v921, 2
        %v943 = vpop.permute.xlu0 %942
        %944 = vrot.lane.b32.xlu0 %v922, 2
        %v945 = vpop.permute.xlu0 %944
        %946 = vrot.lane.b32.xlu0 %v923, 2
        %v947 = vpop.permute.xlu0 %946
        %948 = vrot.lane.b32.xlu0 %v924, 2
        %v949 = vpop.permute.xlu0 %948
        %950 = vrot.lane.b32.xlu0 %v925, 2
        %v951 = vpop.permute.xlu0 %950
        %952 = vrot.lane.b32.xlu0 %v926, 2
        %v953 = vpop.permute.xlu0 %952
        %954 = vrot.lane.b32.xlu0 %v927, 2
        %v955 = vpop.permute.xlu0 %954
        %956 = vrot.lane.b32.xlu0 %v928, 2
        %v957 = vpop.permute.xlu0 %956
        %958 = vrot.lane.b32.xlu0 %v929, 2
        %v959 = vpop.permute.xlu0 %958
        %960 = vrot.lane.b32.xlu0 %v930, 2
        %v961 = vpop.permute.xlu0 %960
        %962 = vrot.lane.b32.xlu0 %v931, 2
        %v963 = vpop.permute.xlu0 %962
        %vm964 = vcmask 15360
        %v965 = vsel %vm964, %v933, %v935
        %v966 = vsel %vm964, %v937, %v939
        %v967 = vsel %vm964, %v941, %v943
        %v968 = vsel %vm964, %v945, %v947
        %v969 = vsel %vm964, %v949, %v951
        %v970 = vsel %vm964, %v953, %v955
        %v971 = vsel %vm964, %v957, %v959
        %v972 = vsel %vm964, %v961, %v963
        %981 = vst.msk [vmem:[%s187 + $0x7] sm:$0x1] %vm682, %v965
        %982 = vst.msk [vmem:[%s187 + $0xf] sm:$0x1] %vm682, %v966
        %983 = vst.msk [vmem:[%s187 + $0x17] sm:$0x1] %vm682, %v967
        %984 = vst.msk [vmem:[%s187 + $0x1f] sm:$0x1] %vm682, %v968
        %985 = vst.msk [vmem:[%s187 + $0x27] sm:$0x1] %vm682, %v969
        %986 = vst.msk [vmem:[%s187 + $0x2f] sm:$0x1] %vm682, %v970
        %987 = vst.msk [vmem:[%s187 + $0x37] sm:$0x1] %vm682, %v971
        %988 = vst.msk [vmem:[%s187 + $0x3f] sm:$0x1] %vm682, %v972
        %s989 = sand.u32 %s109, 1
        %s990 = scalar_lea.sflag [#allocation3], %s989
        %s991 = sand.u32 %s109, 1
        %s992 = smul.addr %s991, 64
        %s993 = scalar_lea.vmem [#allocation2], %s992
        // Predicated region
        $region33: #{quant_conv_bn_relu.1} parent=31 // pred_check
          %p994 = pneg %p119
        $region34: #{quant_conv_bn_relu.1} parent=31 // pred_check_branch
          %996 = sbr.rel (%p994) target = $region36
        $region35: #{quant_conv_bn_relu.1} parent=31 // pred_region
          %998 = vsyncadd %s990, 0
          %s999 = smul.addr %s21, 16
          %s1000 = sadd.s32 %s22, %s999
          %s1001 = smul.addr %s1000, 8
          %s1002 = scalar_lea.hbm %s3, %s1001
          %s1003 = sshll.u32 %s993, 4
          %s1004 = int_to_ptr.vmem [resolvable:$true] %s1003
          %s1005 = sshll.u32 %s1002, 4
          %s1006 = int_to_ptr.hbm [resolvable:$true] %s1005
          %1011 = dma.vmem_to_hbm [thread:$0]  %s1004, 1024, %s1006, %s990, 128, 256, 8
        $region36: #{quant_conv_bn_relu.1} parent=31 // pred_fallthru
          _
      $region32: #{quant_conv_bn_relu.1} parent=5 // pred_fallthru
        _
      %p1012 = scmp.le.s32.totalorder 2, %s12
      // Predicated region
      $region37: #{quant_conv_bn_relu.1} parent=5 // pred_check
        %p1013 = pneg %p1012
      $region38: #{quant_conv_bn_relu.1} parent=5 // pred_check_branch
        %1015 = sbr.rel (%p1013) target = $region40
      $region39: #{quant_conv_bn_relu.1} parent=5 // pred_region
        %s1016 = ssub.s32 %s12, 2
        // Predicated region
        $region41: #{quant_conv_bn_relu.1} parent=39 // pred_check
          %p1017 = pneg %p125
        $region42: #{quant_conv_bn_relu.1} parent=39 // pred_check_branch
          %1019 = sbr.rel (%p1017) target = $region44
        $region43: #{quant_conv_bn_relu.1} parent=39 // pred_region
          %s1020 = sand.u32 %s110, 1
          %s1021 = scalar_lea.sflag [#allocation3], %s1020
          %s1022 = sand.u32 %s110, 1
          %s1023 = smul.addr %s1022, 64
          %s1024 = scalar_lea.vmem [#allocation2], %s1023
          %1026 = dma.done %s1021, 1024
        $region44: #{quant_conv_bn_relu.1} parent=39 // pred_fallthru
          _
      $region40: #{quant_conv_bn_relu.1} parent=5 // pred_fallthru
        _
    $region6: #{quant_conv_bn_relu.1} parent=1 // loop_footer
      %s16 = sadd.s32 1, %s12
    $region7: #{quant_conv_bn_relu.1} parent=1 // loop_footer_branch
      %11 = sbr.rel target = $region3
    $region8: #{quant_conv_bn_relu.1} parent=1 // loop_exit
      _
    %1027 = vsyncpa [#allocation3], 1
    %s1028 = scalar_lea.sflag [#allocation3], 1
    %1029 = vsyncpa %s1028, 1

</llo_original>
